<compile_context>
chip_gen: v7x
topology: tpu7x:2x2x1
jax: 0.10.0
libtpu: 0.0.40
codegen_flags: <defaults>
</compile_context>

<pallas_src>
import functools
import math

import jax
import jax.numpy as jnp
import numpy as np
from jax.experimental import pallas as pl
from jax.experimental.pallas import tpu as pltpu


def _to_2tuple(v):
    if isinstance(v, (tuple, list)):
        assert len(v) == 2
        return tuple(v)
    return (v, v)


def _pad_same_amount(x: int, kernel_size: int, stride: int, dilation: int) -> int:
    return max((math.ceil(x / stride) - 1) * stride + (kernel_size - 1) * dilation + 1 - x, 0)


def _pick_channel_tile(C: int, bytes_per_channel: int) -> int:
    """Largest channel tile (full C, else a divisor of C, preferring multiples of
    128 for lane-dense blocks) that keeps all VMEM buffers under a conservative
    budget (safe for v5e/v6e/v7x default scoped VMEM)."""
    budget = 24 * 1024 * 1024  # headroom under the 32 MiB default scoped VMEM
    cands = [C] + [c for c in (512, 256, 128, 64, 32) if c < C and C % c == 0]
    for tc in cands:
        if tc * bytes_per_channel <= budget:
            return tc
    return cands[-1]


def _maxpool_same_kernel(x_ref, o_ref, pad_ref, *,
                         K, S, D, H, W, Ho, Wo, Hr, Wr, row0, col0, coff, neg):
    """One (image, channel-tile) per grid step.

    x_ref:   (1, H, W, TC)   input block (channels on lanes, W on sublanes)
    o_ref:   (1, Ho, Wo, TC) output block
    pad_ref: (Hr, Wr, TC)    VMEM scratch holding the SAME-padded plane
    """
    k0, k1 = K
    s0, s1 = S
    d0, d1 = D
    dt = pad_ref.dtype
    TC = pad_ref.shape[-1]

    # --- 1) Build the SAME-padded plane in VMEM (no HBM pad pass). -----------
    # Only the border strips get the pad value; the interior is the input block.
    # col0 is sublane(8)-aligned so the interior store is an aligned store.
    if row0 > 0:
        pad_ref[0:row0, :, :] = jnp.full((row0, Wr, TC), neg, dt)
    if row0 + H < Hr:
        pad_ref[row0 + H:Hr, :, :] = jnp.full((Hr - (row0 + H), Wr, TC), neg, dt)
    if col0 > 0:
        pad_ref[:, 0:col0, :] = jnp.full((Hr, col0, TC), neg, dt)
    if col0 + W < Wr:
        pad_ref[:, col0 + W:Wr, :] = jnp.full((Hr, Wr - (col0 + W), TC), neg, dt)
    pad_ref[row0:row0 + H, col0:col0 + W, :] = x_ref[0]

    # --- 2) Max over the k0*k1 (dilated) taps, directly on the output grid. ---
    # Each tap is a single ref access:
    #   rows: contiguous Ho*s0-row chunk starting at kh*d0 (major dim),
    #   cols: sublane-strided load of columns coff + kw*d1 + ow*s1.
    # Row selection (every s0-th row) is then a free major-dim reshape + slice.
    acc = None
    for kh in range(k0):
        r0 = kh * d0
        for kw in range(k1):
            c0 = coff + kw * d1
            if s1 == 1:
                chunk = pad_ref[r0:r0 + Ho * s0, c0:c0 + Wo, :]
            else:
                chunk = pad_ref[r0:r0 + Ho * s0, pl.ds(c0, Wo, stride=s1), :]
            if s0 == 1:
                win = chunk                                          # (Ho, Wo, TC)
            else:
                win = chunk.reshape(Ho, s0, Wo, TC)[:, 0, :, :]      # (Ho, Wo, TC)
            acc = win if acc is None else jnp.maximum(acc, win)

    o_ref[0] = acc.astype(o_ref.dtype)


def max_pool2d_same(x, kernel_size, stride=None, dilation=(1, 1), ceil_mode=False):
    k0, k1 = _to_2tuple(kernel_size)
    s0, s1 = _to_2tuple(stride) if stride is not None else (k0, k1)
    d0, d1 = _to_2tuple(dilation)
    if ceil_mode:
        # TODO(synk): ceil_mode=True output-size rule not implemented (module default is False).
        raise NotImplementedError("ceil_mode=True not supported")

    N, C, H, W = x.shape
    dtype = x.dtype
    if jnp.issubdtype(dtype, jnp.floating):
        neg = float("-inf")
    elif jnp.issubdtype(dtype, jnp.integer):
        neg = int(jnp.iinfo(dtype).min)
    else:
        raise NotImplementedError(f"unsupported dtype {dtype}")

    pad_h = _pad_same_amount(H, k0, s0, d0)
    pad_w = _pad_same_amount(W, k1, s1, d1)
    pt, pwl = pad_h // 2, pad_w // 2
    Hp, Wp = H + pad_h, W + pad_w
    Ho = (Hp - (k0 - 1) * d0 - 1) // s0 + 1      # floor-mode output size (ceil_mode=False)
    Wo = (Wp - (k1 - 1) * d1 - 1) // s1 + 1

    # In-kernel padded-plane geometry:
    #  rows: scratch row == padded row; a few extra -inf rows so every tap can
    #        load a contiguous Ho*s0-row chunk for the reshape row-select.
    #  cols: the input starts at a sublane(8)-aligned column col0 >= left pad;
    #        all in-kernel column offsets are shifted by coff = col0 - pwl.
    col0 = (-(-pwl // 8)) * 8 if pad_w > 0 else 0
    coff = col0 - pwl
    Hr = (k0 - 1) * d0 + Ho * s0
    Wr = coff + Wp

    # VMEM budget: double-buffered input + output blocks, the padded scratch
    # plane, and headroom for live tap/accumulator temporaries.
    per_chan_elems = 2 * H * W + 2 * Ho * Wo + Hr * Wr + (s0 + 2) * Ho * Wo
    TC = _pick_channel_tile(C, per_chan_elems * jnp.dtype(dtype).itemsize)

    x_nhwc = jnp.transpose(x, (0, 2, 3, 1))      # channels-last: C on the lane dim

    kernel = functools.partial(
        _maxpool_same_kernel,
        K=(k0, k1), S=(s0, s1), D=(d0, d1), H=H, W=W, Ho=Ho, Wo=Wo,
        Hr=Hr, Wr=Wr, row0=pt, col0=col0, coff=coff, neg=neg,
    )

    out = pl.pallas_call(
        kernel,
        out_shape=jax.ShapeDtypeStruct((N, Ho, Wo, C), dtype),
        grid=(N, C // TC),
        in_specs=[pl.BlockSpec((1, H, W, TC), lambda n, c: (n, 0, 0, c))],
        out_specs=pl.BlockSpec((1, Ho, Wo, TC), lambda n, c: (n, 0, 0, c)),
        scratch_shapes=[pltpu.VMEM((Hr, Wr, TC), dtype)],
        compiler_params=pltpu.CompilerParams(
            dimension_semantics=("parallel", "parallel")),
    )(x_nhwc)

    return jnp.transpose(out, (0, 3, 1, 2))      # back to NCHW (module contract)


class MaxPool2dSame:
    """JAX/Pallas equivalent of the PyTorch MaxPool2dSame module (no parameters)."""

    def __init__(self, kernel_size, stride=None, dilation=1, ceil_mode=False):
        self.kernel_size = _to_2tuple(kernel_size)
        self.stride = _to_2tuple(stride) if stride is not None else self.kernel_size
        self.dilation = _to_2tuple(dilation)
        self.ceil_mode = ceil_mode

    def __call__(self, x):
        return max_pool2d_same(x, self.kernel_size, self.stride, self.dilation, self.ceil_mode)


def _reference(x, kernel_size, stride, dilation=(1, 1)):
    """Pure-JAX reference: SAME pad with -inf, then VALID reduce_window max."""
    k0, k1 = kernel_size
    s0, s1 = stride
    d0, d1 = dilation
    pad_h = _pad_same_amount(x.shape[2], k0, s0, d0)
    pad_w = _pad_same_amount(x.shape[3], k1, s1, d1)
    xp = jnp.pad(
        x,
        ((0, 0), (0, 0),
         (pad_h // 2, pad_h - pad_h // 2),
         (pad_w // 2, pad_w - pad_w // 2)),
        constant_values=-jnp.inf,
    )
    return jax.lax.reduce_window(
        xp, -jnp.inf, jax.lax.max,
        window_dimensions=(1, 1, k0, k1),
        window_strides=(1, 1, s0, s1),
        window_dilation=(1, 1, d0, d1),
        padding="VALID",
    )


if __name__ == "__main__":
    key = jax.random.PRNGKey(0)
    x = jax.random.normal(key, (2, 4, 16, 16), dtype=jnp.float32)  # NCHW

    # Primary config (matches the module's typical use): k=3, s=2, SAME padding.
    pool = MaxPool2dSame(kernel_size=3, stride=2)
    y = pool(x)
    jax.block_until_ready(y)
    ref = _reference(x, pool.kernel_size, pool.stride, pool.dilation)
    assert y.shape == ref.shape == (2, 4, 8, 8), (y.shape, ref.shape)
    np.testing.assert_allclose(np.asarray(y), np.asarray(ref), rtol=0, atol=0)

    # Extra configs: no-pad path (k=2, s=2), unit-stride path (k=3, s=1),
    # and a dilated window (k=3, s=2, d=2).
    for ks, st, dl in ((2, 2, 1), (3, 1, 1), (3, 2, 2)):
        p = MaxPool2dSame(kernel_size=ks, stride=st, dilation=dl)
        y2 = p(x)
        jax.block_until_ready(y2)
        r2 = _reference(x, p.kernel_size, p.stride, p.dilation)
        assert y2.shape == r2.shape, (y2.shape, r2.shape)
        np.testing.assert_allclose(np.asarray(y2), np.asarray(r2), rtol=0, atol=0)

    print("KERNEL_OK")
</pallas_src>

<mosaic_0001>
module attributes {stable_mosaic.version = 11 : i64} {
  func.func @_maxpool_same_kernel(%arg0: i32, %arg1: i32, %arg2: memref<1x16x16x4xf32, #tpu.memory_space<vmem>>, %arg3: memref<1x8x8x4xf32, #tpu.memory_space<vmem>>, %arg4: memref<18x17x4xf32, #tpu.memory_space<vmem>>) attributes {dimension_semantics = [#tpu.dimension_semantics<parallel>, #tpu.dimension_semantics<parallel>], iteration_bounds = array<i64: 2, 1>, scalar_prefetch = 0 : i64, scratch_operands = 1 : i64, tpu.core_type = #tpu.core_type<tc>, window_params = [{transform_indices = @transform_0, window_bounds = array<i64: 1, 16, 16, 4>}, {transform_indices = @transform_1, window_bounds = array<i64: 1, 8, 8, 4>}]} {
    %cst = arith.constant 0xFF800000 : f32
    %0 = vector.broadcast %cst : f32 to vector<2x17x4xf32>
    %c16 = arith.constant 16 : index
    %c0 = arith.constant 0 : index
    %c0_0 = arith.constant 0 : index
    %1 = vector.load %arg4[%c16, %c0, %c0_0] : memref<18x17x4xf32, #tpu.memory_space<vmem>>, vector<2x17x4xf32>
    tpu.vector_store %arg4[%c16, %c0, %c0_0], %0 {strides = array<i32>} : memref<18x17x4xf32, #tpu.memory_space<vmem>>, vector<2x17x4xf32>,
    %cst_1 = arith.constant 0xFF800000 : f32
    %2 = vector.broadcast %cst_1 : f32 to vector<18x1x4xf32>
    %c0_2 = arith.constant 0 : index
    %c16_3 = arith.constant 16 : index
    %c0_4 = arith.constant 0 : index
    %3 = vector.load %arg4[%c0_2, %c16_3, %c0_4] : memref<18x17x4xf32, #tpu.memory_space<vmem>>, vector<18x1x4xf32>
    tpu.vector_store %arg4[%c0_2, %c16_3, %c0_4], %2 {strides = array<i32>} : memref<18x17x4xf32, #tpu.memory_space<vmem>>, vector<18x1x4xf32>,
    %c0_5 = arith.constant 0 : index
    %c0_6 = arith.constant 0 : index
    %c0_7 = arith.constant 0 : index
    %c0_8 = arith.constant 0 : index
    %4 = vector.load %arg2[%c0_5, %c0_6, %c0_7, %c0_8] : memref<1x16x16x4xf32, #tpu.memory_space<vmem>>, vector<1x16x16x4xf32>
    %5 = vector.shape_cast %4 : vector<1x16x16x4xf32> to vector<16x16x4xf32>
    %c0_9 = arith.constant 0 : index
    %c0_10 = arith.constant 0 : index
    %c0_11 = arith.constant 0 : index
    %6 = vector.load %arg4[%c0_9, %c0_10, %c0_11] : memref<18x17x4xf32, #tpu.memory_space<vmem>>, vector<16x16x4xf32>
    tpu.vector_store %arg4[%c0_9, %c0_10, %c0_11], %5 {strides = array<i32>} : memref<18x17x4xf32, #tpu.memory_space<vmem>>, vector<16x16x4xf32>,
    %c0_12 = arith.constant 0 : index
    %c0_13 = arith.constant 0 : index
    %c0_14 = arith.constant 0 : index
    %7 = tpu.strided_load %arg4[%c0_12, %c0_13, %c0_14] {strides = array<i32: 1, 2, 1>} : memref<18x17x4xf32, #tpu.memory_space<vmem>>, vector<16x8x4xf32>
    %8 = vector.shape_cast %7 : vector<16x8x4xf32> to vector<8x2x8x4xf32>
    %9 = vector.extract_strided_slice %8 {offsets = [0, 0, 0, 0], sizes = [8, 1, 8, 4], strides = [1, 1, 1, 1]} : vector<8x2x8x4xf32> to vector<8x1x8x4xf32>
    %10 = vector.shape_cast %9 : vector<8x1x8x4xf32> to vector<8x8x4xf32>
    %c0_15 = arith.constant 0 : index
    %c1 = arith.constant 1 : index
    %c0_16 = arith.constant 0 : index
    %11 = tpu.strided_load %arg4[%c0_15, %c1, %c0_16] {strides = array<i32: 1, 2, 1>} : memref<18x17x4xf32, #tpu.memory_space<vmem>>, vector<16x8x4xf32>
    %12 = vector.shape_cast %11 : vector<16x8x4xf32> to vector<8x2x8x4xf32>
    %13 = vector.extract_strided_slice %12 {offsets = [0, 0, 0, 0], sizes = [8, 1, 8, 4], strides = [1, 1, 1, 1]} : vector<8x2x8x4xf32> to vector<8x1x8x4xf32>
    %14 = vector.shape_cast %13 : vector<8x1x8x4xf32> to vector<8x8x4xf32>
    %15 = arith.maximumf %10, %14 : vector<8x8x4xf32>
    %c0_17 = arith.constant 0 : index
    %c2 = arith.constant 2 : index
    %c0_18 = arith.constant 0 : index
    %16 = tpu.strided_load %arg4[%c0_17, %c2, %c0_18] {strides = array<i32: 1, 2, 1>} : memref<18x17x4xf32, #tpu.memory_space<vmem>>, vector<16x8x4xf32>
    %17 = vector.shape_cast %16 : vector<16x8x4xf32> to vector<8x2x8x4xf32>
    %18 = vector.extract_strided_slice %17 {offsets = [0, 0, 0, 0], sizes = [8, 1, 8, 4], strides = [1, 1, 1, 1]} : vector<8x2x8x4xf32> to vector<8x1x8x4xf32>
    %19 = vector.shape_cast %18 : vector<8x1x8x4xf32> to vector<8x8x4xf32>
    %20 = arith.maximumf %15, %19 : vector<8x8x4xf32>
    %c1_19 = arith.constant 1 : index
    %c0_20 = arith.constant 0 : index
    %c0_21 = arith.constant 0 : index
    %21 = tpu.strided_load %arg4[%c1_19, %c0_20, %c0_21] {strides = array<i32: 1, 2, 1>} : memref<18x17x4xf32, #tpu.memory_space<vmem>>, vector<16x8x4xf32>
    %22 = vector.shape_cast %21 : vector<16x8x4xf32> to vector<8x2x8x4xf32>
    %23 = vector.extract_strided_slice %22 {offsets = [0, 0, 0, 0], sizes = [8, 1, 8, 4], strides = [1, 1, 1, 1]} : vector<8x2x8x4xf32> to vector<8x1x8x4xf32>
    %24 = vector.shape_cast %23 : vector<8x1x8x4xf32> to vector<8x8x4xf32>
    %25 = arith.maximumf %20, %24 : vector<8x8x4xf32>
    %c1_22 = arith.constant 1 : index
    %c1_23 = arith.constant 1 : index
    %c0_24 = arith.constant 0 : index
    %26 = tpu.strided_load %arg4[%c1_22, %c1_23, %c0_24] {strides = array<i32: 1, 2, 1>} : memref<18x17x4xf32, #tpu.memory_space<vmem>>, vector<16x8x4xf32>
    %27 = vector.shape_cast %26 : vector<16x8x4xf32> to vector<8x2x8x4xf32>
    %28 = vector.extract_strided_slice %27 {offsets = [0, 0, 0, 0], sizes = [8, 1, 8, 4], strides = [1, 1, 1, 1]} : vector<8x2x8x4xf32> to vector<8x1x8x4xf32>
    %29 = vector.shape_cast %28 : vector<8x1x8x4xf32> to vector<8x8x4xf32>
    %30 = arith.maximumf %25, %29 : vector<8x8x4xf32>
    %c1_25 = arith.constant 1 : index
    %c2_26 = arith.constant 2 : index
    %c0_27 = arith.constant 0 : index
    %31 = tpu.strided_load %arg4[%c1_25, %c2_26, %c0_27] {strides = array<i32: 1, 2, 1>} : memref<18x17x4xf32, #tpu.memory_space<vmem>>, vector<16x8x4xf32>
    %32 = vector.shape_cast %31 : vector<16x8x4xf32> to vector<8x2x8x4xf32>
    %33 = vector.extract_strided_slice %32 {offsets = [0, 0, 0, 0], sizes = [8, 1, 8, 4], strides = [1, 1, 1, 1]} : vector<8x2x8x4xf32> to vector<8x1x8x4xf32>
    %34 = vector.shape_cast %33 : vector<8x1x8x4xf32> to vector<8x8x4xf32>
    %35 = arith.maximumf %30, %34 : vector<8x8x4xf32>
    %c2_28 = arith.constant 2 : index
    %c0_29 = arith.constant 0 : index
    %c0_30 = arith.constant 0 : index
    %36 = tpu.strided_load %arg4[%c2_28, %c0_29, %c0_30] {strides = array<i32: 1, 2, 1>} : memref<18x17x4xf32, #tpu.memory_space<vmem>>, vector<16x8x4xf32>
    %37 = vector.shape_cast %36 : vector<16x8x4xf32> to vector<8x2x8x4xf32>
    %38 = vector.extract_strided_slice %37 {offsets = [0, 0, 0, 0], sizes = [8, 1, 8, 4], strides = [1, 1, 1, 1]} : vector<8x2x8x4xf32> to vector<8x1x8x4xf32>
    %39 = vector.shape_cast %38 : vector<8x1x8x4xf32> to vector<8x8x4xf32>
    %40 = arith.maximumf %35, %39 : vector<8x8x4xf32>
    %c2_31 = arith.constant 2 : index
    %c1_32 = arith.constant 1 : index
    %c0_33 = arith.constant 0 : index
    %41 = tpu.strided_load %arg4[%c2_31, %c1_32, %c0_33] {strides = array<i32: 1, 2, 1>} : memref<18x17x4xf32, #tpu.memory_space<vmem>>, vector<16x8x4xf32>
    %42 = vector.shape_cast %41 : vector<16x8x4xf32> to vector<8x2x8x4xf32>
    %43 = vector.extract_strided_slice %42 {offsets = [0, 0, 0, 0], sizes = [8, 1, 8, 4], strides = [1, 1, 1, 1]} : vector<8x2x8x4xf32> to vector<8x1x8x4xf32>
    %44 = vector.shape_cast %43 : vector<8x1x8x4xf32> to vector<8x8x4xf32>
    %45 = arith.maximumf %40, %44 : vector<8x8x4xf32>
    %c2_34 = arith.constant 2 : index
    %c2_35 = arith.constant 2 : index
    %c0_36 = arith.constant 0 : index
    %46 = tpu.strided_load %arg4[%c2_34, %c2_35, %c0_36] {strides = array<i32: 1, 2, 1>} : memref<18x17x4xf32, #tpu.memory_space<vmem>>, vector<16x8x4xf32>
    %47 = vector.shape_cast %46 : vector<16x8x4xf32> to vector<8x2x8x4xf32>
    %48 = vector.extract_strided_slice %47 {offsets = [0, 0, 0, 0], sizes = [8, 1, 8, 4], strides = [1, 1, 1, 1]} : vector<8x2x8x4xf32> to vector<8x1x8x4xf32>
    %49 = vector.shape_cast %48 : vector<8x1x8x4xf32> to vector<8x8x4xf32>
    %50 = arith.maximumf %45, %49 : vector<8x8x4xf32>
    %c0_37 = arith.constant 0 : index
    %c0_38 = arith.constant 0 : index
    %c0_39 = arith.constant 0 : index
    %c0_40 = arith.constant 0 : index
    %51 = vector.load %arg3[%c0_37, %c0_38, %c0_39, %c0_40] : memref<1x8x8x4xf32, #tpu.memory_space<vmem>>, vector<1x8x8x4xf32>
    %52 = vector.shape_cast %51 : vector<1x8x8x4xf32> to vector<8x8x4xf32>
    %53 = vector.shape_cast %50 : vector<8x8x4xf32> to vector<1x8x8x4xf32>
    tpu.vector_store %arg3[%c0_37, %c0_38, %c0_39, %c0_40], %53 {strides = array<i32>} : memref<1x8x8x4xf32, #tpu.memory_space<vmem>>, vector<1x8x8x4xf32>,
    return
  }
  func.func @transform_0(%arg0: i32, %arg1: i32) -> (i32, i32, i32, i32) {
    %c0_i32 = arith.constant 0 : i32
    %c0_i32_0 = arith.constant 0 : i32
    %c0_i32_1 = arith.constant 0 : i32
    return %arg0, %c0_i32, %c0_i32_0, %arg1 : i32, i32, i32, i32
  }
  func.func @transform_1(%arg0: i32, %arg1: i32) -> (i32, i32, i32, i32) {
    %c0_i32 = arith.constant 0 : i32
    %c0_i32_0 = arith.constant 0 : i32
    %c0_i32_1 = arith.constant 0 : i32
    return %arg0, %c0_i32, %c0_i32_0, %arg1 : i32, i32, i32, i32
  }
}

</mosaic_0001>

<llo_original>
// kernel: tpu_custom_call.1
$region0: #{tpu_custom_call.1}
  #allocation0 [shape = 'u32[]', space=smem, size = 0x4, offset = 0x4, fixed_abs, tag = 'smem constant byte address 0x4 - core index']
  #allocation1 [shape = 'u32[144,128]{1,0:T(1,128)}', space=vmem, size = 0x12000, scoped, tag = 'internal scratch']
  #allocation2 [shape = 'f32[18,17,4]{2,1,0:T(8,128)}', space=vmem, size = 0x36000, scoped, tag = 'scratch operand']
  %s0 = inlined_call_operand.vmem [shape: f32[2,16,16,4], index: 0, kind: input, shape index: {}]
  %s1 = inlined_call_operand.vmem [shape: f32[2,8,8,4], index: 1, kind: output, shape index: {}]
  %s2 = sld [smem:[#allocation0]]
  $region37: #{tpu_custom_call.1} parent=0
    _
  %s4 = ssub.s32 1, %s2
  %s5 = scalar_select 0, %s4, %s2
  loop: start=0, step=1, limit=4
  $region2: #{tpu_custom_call.1} parent=0 // loop_pre_header
    _
  $region3: #{tpu_custom_call.1} parent=0 // loop_header
    %s7 = sphi 0, %s11
    %p8 = scmp.ge.s32.totalorder %s7, 4
    %s14 = sphi 0, %s26
    %s15 = sphi 0, %s22
    %s16 = sphi 0, %s14
    %s17 = sphi 0, %s15
    %s18 = sphi 0, %s16
    %s19 = sphi 0, %s17
    %s31 = sphi 0, %s33
    %s34 = sphi 0, %s31
    %s35 = sphi 0, %s34
    %s51 = sphi 0, %s35
    %s59 = sphi 0, %s61
    %s62 = sphi 0, %s59
    %s63 = sphi 0, %s62
    %s79 = sphi 0, %s63
  $region4: #{tpu_custom_call.1} parent=0 // loop_header_branch
    %10 = sbr.rel (%p8) target = $region8
  $region5: #{tpu_custom_call.1} parent=0 // loop_body
    %s12 = ssub.s32 %s7, 1
    %s13 = ssub.s32 %s7, 2
    %s20 = sadd.s32 1, %s15
    %p21 = scmp.ge.s32.totalorder %s20, 1
    %s22 = scalar_select %p21, 0, %s20
    %s23 = sadd.s32 1, %s14
    %s24 = scalar_select %p21, %s23, %s14
    %p25 = scmp.ge.s32.totalorder %s24, 2
    %s26 = scalar_select %p25, 0, %s24
    %s27 = ssub.s32 %s14, %s26
    %s28 = ssub.s32 %s15, %s22
    %s29 = sor.u32 %s27, %s28
    %p30 = scmp.eq.s32.totalorder %s29, 0
    %s32 = sadd.s32 %s31, 1
    %s33 = scalar_select %p30, %s31, %s32
    %p36 = pneg %p30
    %p37 = scmp.eq.s32.totalorder %s7, 1
    %p38 = por %p36, %p37
    %p39 = scmp.ne.s32.totalorder %s31, %s34
    %p40 = scmp.eq.s32.totalorder %s7, 0
    %p41 = por %p39, %p40
    %p42 = scmp.ne.s32.totalorder %s31, %s34
    %p43 = scmp.eq.s32.totalorder %s12, 1
    %p44 = por %p42, %p43
    %p45 = scmp.ne.s32.totalorder %s34, %s35
    %p46 = scmp.eq.s32.totalorder %s12, 0
    %p47 = por %p45, %p46
    %p48 = scmp.ne.s32.totalorder %s34, %s35
    %p49 = scmp.eq.s32.totalorder %s13, 1
    %p50 = por %p48, %p49
    %p52 = scmp.ne.s32.totalorder %s35, %s51
    %p53 = scmp.eq.s32.totalorder %s13, 0
    %p54 = por %p52, %p53
    %s55 = ssub.s32 %s14, %s26
    %s56 = ssub.s32 %s15, %s22
    %s57 = sor.u32 %s55, %s56
    %p58 = scmp.eq.s32.totalorder %s57, 0
    %s60 = sadd.s32 %s59, 1
    %s61 = scalar_select %p58, %s59, %s60
    %p64 = pneg %p58
    %p65 = scmp.eq.s32.totalorder %s7, 1
    %p66 = por %p64, %p65
    %p67 = scmp.ne.s32.totalorder %s59, %s62
    %p68 = scmp.eq.s32.totalorder %s7, 0
    %p69 = por %p67, %p68
    %p70 = scmp.ne.s32.totalorder %s59, %s62
    %p71 = scmp.eq.s32.totalorder %s12, 1
    %p72 = por %p70, %p71
    %p73 = scmp.ne.s32.totalorder %s62, %s63
    %p74 = scmp.eq.s32.totalorder %s12, 0
    %p75 = por %p73, %p74
    %p76 = scmp.ne.s32.totalorder %s62, %s63
    %p77 = scmp.eq.s32.totalorder %s13, 1
    %p78 = por %p76, %p77
    %p80 = scmp.ne.s32.totalorder %s63, %s79
    %p81 = scmp.eq.s32.totalorder %s13, 0
    %p82 = por %p80, %p81
    %p83 = scmp.le.s32.totalorder 1, %s7
    %p84 = scmp.lt.s32.totalorder %s7, 3
    %p85 = pnand %p83, %p84
    %p86 = pneg %p85
    // Predicated region
    $region9: #{tpu_custom_call.1} parent=5 // pred_check
      _
    $region10: #{tpu_custom_call.1} parent=5 // pred_check_branch
      %88 = sbr.rel (%p85) target = $region12
    $region11: #{tpu_custom_call.1} parent=5 // pred_region
      %s89 = ssub.s32 %s7, 1
    $region12: #{tpu_custom_call.1} parent=5 // pred_fallthru
      _
    %p90 = scmp.lt.s32.totalorder %s7, 2
    // Predicated region
    $region13: #{tpu_custom_call.1} parent=5 // pred_check
      %p91 = pneg %p90
    $region14: #{tpu_custom_call.1} parent=5 // pred_check_branch
      %93 = sbr.rel (%p91) target = $region16
    $region15: #{tpu_custom_call.1} parent=5 // pred_region
      // Predicated region
      $region17: #{tpu_custom_call.1} parent=15 // pred_check
        %p94 = pneg %p41
      $region18: #{tpu_custom_call.1} parent=15 // pred_check_branch
        %96 = sbr.rel (%p94) target = $region20
      $region19: #{tpu_custom_call.1} parent=15 // pred_region
        %p97 = scmp.lt.s32.totalorder %s14, 1
        %s98 = scalar_select %p97, %s14, 1
        %p99 = scmp.lt.s32.totalorder %s15, 0
        %s100 = scalar_select %p99, %s15, 0
        %s101 = smul.addr %s98, 32
        %s102 = sadd.s32 %s100, %s101
        %s103 = smul.addr %s102, 8
        %s104 = scalar_lea.vmem %s0, %s103
      $region20: #{tpu_custom_call.1} parent=15 // pred_fallthru
        _
    $region16: #{tpu_custom_call.1} parent=5 // pred_fallthru
      _
    %p105 = scmp.le.s32.totalorder 1, %s7
    %p106 = scmp.lt.s32.totalorder %s7, 3
    %p107 = pnand %p105, %p106
    %p108 = pneg %p107
    // Predicated region
    $region21: #{tpu_custom_call.1} parent=5 // pred_check
      _
    $region22: #{tpu_custom_call.1} parent=5 // pred_check_branch
      %110 = sbr.rel (%p107) target = $region24
    $region23: #{tpu_custom_call.1} parent=5 // pred_region
      %s111 = ssub.s32 %s7, 1
      %p112 = scmp.lt.s32.totalorder %s16, 1
      %s113 = scalar_select %p112, %s16, 1
      %p114 = scmp.lt.s32.totalorder %s17, 0
      %s115 = scalar_select %p114, %s17, 0
      %s116 = smul.addr %s113, 32
      %s117 = sadd.s32 %s115, %s116
      %s118 = smul.addr %s117, 8
      %s119 = scalar_lea.vmem %s0, %s118
      %p120 = pneg %p47
      %p121 = pneg %p44
      %p122 = pneg %p75
      %p123 = pneg %p72
      %p124 = scmp.lt.s32.totalorder %s16, 1
      %s125 = scalar_select %p124, %s16, 1
      %p126 = scmp.lt.s32.totalorder %s17, 0
      %s127 = scalar_select %p126, %s17, 0
      %s128 = smul.addr %s125, 8
      %s129 = sadd.s32 %s127, %s128
      %s130 = smul.addr %s129, 8
      %s131 = scalar_lea.vmem %s1, %s130
      %p132 = scmp.lt.s32.totalorder %s16, 1
      %s133 = scalar_select %p132, %s16, 1
      %p134 = scmp.lt.s32.totalorder %s17, 0
      %s135 = scalar_select %p134, %s17, 0
      %s136 = smul.addr %s133, 32
      %s137 = sadd.s32 %s135, %s136
      %s138 = smul.addr %s137, 8
      %s139 = scalar_lea.vmem %s0, %s138
      %p140 = scmp.lt.s32.totalorder %s16, 1
      %s141 = scalar_select %p140, %s16, 1
      %p142 = scmp.lt.s32.totalorder %s17, 0
      %s143 = scalar_select %p142, %s17, 0
      %s144 = smul.addr %s141, 8
      %s145 = sadd.s32 %s143, %s144
      %s146 = smul.addr %s145, 8
      %s147 = scalar_lea.vmem %s1, %s146
      %s148 = scalar_lea.vmem [#allocation2], 384
      %vm149 = vcmask 31744
      %150 = vst.msk [vmem:[%s148] sm:$0xff] %vm149, -inf
      %151 = vst.msk [vmem:[%s148 + $0x8] sm:$0xff] %vm149, -inf
      %vm152 = vcmask 24576
      %153 = vst.msk [vmem:[%s148 + $0x10] sm:$0x1] %vm152, -inf
      %154 = vst.msk [vmem:[%s148 + $0x18] sm:$0xff] %vm149, -inf
      %155 = vst.msk [vmem:[%s148 + $0x20] sm:$0xff] %vm149, -inf
      %156 = vst.msk [vmem:[%s148 + $0x28] sm:$0x1] %vm152, -inf
      %157 = vst.msk [vmem:[#allocation2 + $0x10] sm:$0x1] %vm152, -inf
      %158 = vst.msk [vmem:[#allocation2 + $0x28] sm:$0x1] %vm152, -inf
      %159 = vst.msk [vmem:[#allocation2 + $0x40] sm:$0x1] %vm152, -inf
      %160 = vst.msk [vmem:[#allocation2 + $0x58] sm:$0x1] %vm152, -inf
      %161 = vst.msk [vmem:[#allocation2 + $0x70] sm:$0x1] %vm152, -inf
      %162 = vst.msk [vmem:[#allocation2 + $0x88] sm:$0x1] %vm152, -inf
      %163 = vst.msk [vmem:[#allocation2 + $0xa0] sm:$0x1] %vm152, -inf
      %164 = vst.msk [vmem:[#allocation2 + $0xb8] sm:$0x1] %vm152, -inf
      %165 = vst.msk [vmem:[#allocation2 + $0xd0] sm:$0x1] %vm152, -inf
      %166 = vst.msk [vmem:[#allocation2 + $0xe8] sm:$0x1] %vm152, -inf
      %167 = vst.msk [vmem:[#allocation2 + $0x100] sm:$0x1] %vm152, -inf
      %168 = vst.msk [vmem:[#allocation2 + $0x118] sm:$0x1] %vm152, -inf
      %169 = vst.msk [vmem:[#allocation2 + $0x130] sm:$0x1] %vm152, -inf
      %170 = vst.msk [vmem:[#allocation2 + $0x148] sm:$0x1] %vm152, -inf
      %171 = vst.msk [vmem:[#allocation2 + $0x160] sm:$0x1] %vm152, -inf
      %172 = vst.msk [vmem:[#allocation2 + $0x178] sm:$0x1] %vm152, -inf
      %173 = vst.msk [vmem:[#allocation2 + $0x190] sm:$0x1] %vm152, -inf
      %174 = vst.msk [vmem:[#allocation2 + $0x1a8] sm:$0x1] %vm152, -inf
      %v175 = vld [vmem:[%s139] sm:$0xff]
      %v176 = vld [vmem:[%s139 + $0x8] sm:$0xff]
      %v177 = vld [vmem:[%s139 + $0x10] sm:$0xff]
      %v178 = vld [vmem:[%s139 + $0x18] sm:$0xff]
      %v179 = vld [vmem:[%s139 + $0x20] sm:$0xff]
      %v180 = vld [vmem:[%s139 + $0x28] sm:$0xff]
      %v181 = vld [vmem:[%s139 + $0x30] sm:$0xff]
      %v182 = vld [vmem:[%s139 + $0x38] sm:$0xff]
      %v183 = vld [vmem:[%s139 + $0x40] sm:$0xff]
      %v184 = vld [vmem:[%s139 + $0x48] sm:$0xff]
      %v185 = vld [vmem:[%s139 + $0x50] sm:$0xff]
      %v186 = vld [vmem:[%s139 + $0x58] sm:$0xff]
      %v187 = vld [vmem:[%s139 + $0x60] sm:$0xff]
      %v188 = vld [vmem:[%s139 + $0x68] sm:$0xff]
      %v189 = vld [vmem:[%s139 + $0x70] sm:$0xff]
      %v190 = vld [vmem:[%s139 + $0x78] sm:$0xff]
      %v191 = vld [vmem:[%s139 + $0x80] sm:$0xff]
      %v192 = vld [vmem:[%s139 + $0x88] sm:$0xff]
      %v193 = vld [vmem:[%s139 + $0x90] sm:$0xff]
      %v194 = vld [vmem:[%s139 + $0x98] sm:$0xff]
      %v195 = vld [vmem:[%s139 + $0xa0] sm:$0xff]
      %v196 = vld [vmem:[%s139 + $0xa8] sm:$0xff]
      %v197 = vld [vmem:[%s139 + $0xb0] sm:$0xff]
      %v198 = vld [vmem:[%s139 + $0xb8] sm:$0xff]
      %v199 = vld [vmem:[%s139 + $0xc0] sm:$0xff]
      %v200 = vld [vmem:[%s139 + $0xc8] sm:$0xff]
      %v201 = vld [vmem:[%s139 + $0xd0] sm:$0xff]
      %v202 = vld [vmem:[%s139 + $0xd8] sm:$0xff]
      %v203 = vld [vmem:[%s139 + $0xe0] sm:$0xff]
      %v204 = vld [vmem:[%s139 + $0xe8] sm:$0xff]
      %v205 = vld [vmem:[%s139 + $0xf0] sm:$0xff]
      %v206 = vld [vmem:[%s139 + $0xf8] sm:$0xff]
      %207 = vst.msk [vmem:[#allocation2] sm:$0xff] %vm149, %v175
      %208 = vst.msk [vmem:[#allocation2 + $0x8] sm:$0xff] %vm149, %v176
      %209 = vst.msk [vmem:[#allocation2 + $0x18] sm:$0xff] %vm149, %v177
      %210 = vst.msk [vmem:[#allocation2 + $0x20] sm:$0xff] %vm149, %v178
      %211 = vst.msk [vmem:[#allocation2 + $0x30] sm:$0xff] %vm149, %v179
      %212 = vst.msk [vmem:[#allocation2 + $0x38] sm:$0xff] %vm149, %v180
      %213 = vst.msk [vmem:[#allocation2 + $0x48] sm:$0xff] %vm149, %v181
      %214 = vst.msk [vmem:[#allocation2 + $0x50] sm:$0xff] %vm149, %v182
      %215 = vst.msk [vmem:[#allocation2 + $0x60] sm:$0xff] %vm149, %v183
      %216 = vst.msk [vmem:[#allocation2 + $0x68] sm:$0xff] %vm149, %v184
      %217 = vst.msk [vmem:[#allocation2 + $0x78] sm:$0xff] %vm149, %v185
      %218 = vst.msk [vmem:[#allocation2 + $0x80] sm:$0xff] %vm149, %v186
      %219 = vst.msk [vmem:[#allocation2 + $0x90] sm:$0xff] %vm149, %v187
      %220 = vst.msk [vmem:[#allocation2 + $0x98] sm:$0xff] %vm149, %v188
      %221 = vst.msk [vmem:[#allocation2 + $0xa8] sm:$0xff] %vm149, %v189
      %222 = vst.msk [vmem:[#allocation2 + $0xb0] sm:$0xff] %vm149, %v190
      %223 = vst.msk [vmem:[#allocation2 + $0xc0] sm:$0xff] %vm149, %v191
      %224 = vst.msk [vmem:[#allocation2 + $0xc8] sm:$0xff] %vm149, %v192
      %225 = vst.msk [vmem:[#allocation2 + $0xd8] sm:$0xff] %vm149, %v193
      %226 = vst.msk [vmem:[#allocation2 + $0xe0] sm:$0xff] %vm149, %v194
      %227 = vst.msk [vmem:[#allocation2 + $0xf0] sm:$0xff] %vm149, %v195
      %228 = vst.msk [vmem:[#allocation2 + $0xf8] sm:$0xff] %vm149, %v196
      %229 = vst.msk [vmem:[#allocation2 + $0x108] sm:$0xff] %vm149, %v197
      %230 = vst.msk [vmem:[#allocation2 + $0x110] sm:$0xff] %vm149, %v198
      %231 = vst.msk [vmem:[#allocation2 + $0x120] sm:$0xff] %vm149, %v199
      %232 = vst.msk [vmem:[#allocation2 + $0x128] sm:$0xff] %vm149, %v200
      %233 = vst.msk [vmem:[#allocation2 + $0x138] sm:$0xff] %vm149, %v201
      %234 = vst.msk [vmem:[#allocation2 + $0x140] sm:$0xff] %vm149, %v202
      %235 = vst.msk [vmem:[#allocation2 + $0x150] sm:$0xff] %vm149, %v203
      %236 = vst.msk [vmem:[#allocation2 + $0x158] sm:$0xff] %vm149, %v204
      %237 = vst.msk [vmem:[#allocation2 + $0x168] sm:$0xff] %vm149, %v205
      %238 = vst.msk [vmem:[#allocation2 + $0x170] sm:$0xff] %vm149, %v206
      %v239 = vld [vmem:[#allocation2] ss:$2 sm:$0xff]
      %s240 = scalar_lea.vmem [#allocation2], 48
      %v241 = vld [vmem:[%s240] ss:$2 sm:$0xff]
      %s242 = scalar_lea.vmem [#allocation2], 96
      %v243 = vld [vmem:[%s242] ss:$2 sm:$0xff]
      %s244 = scalar_lea.vmem [#allocation2], 144
      %v245 = vld [vmem:[%s244] ss:$2 sm:$0xff]
      %s246 = scalar_lea.vmem [#allocation2], 192
      %v247 = vld [vmem:[%s246] ss:$2 sm:$0xff]
      %s248 = scalar_lea.vmem [#allocation2], 240
      %v249 = vld [vmem:[%s248] ss:$2 sm:$0xff]
      %s250 = scalar_lea.vmem [#allocation2], 288
      %v251 = vld [vmem:[%s250] ss:$2 sm:$0xff]
      %s252 = scalar_lea.vmem [#allocation2], 336
      %v253 = vld [vmem:[%s252] ss:$2 sm:$0xff]
      %s254 = scalar_lea.vmem [#allocation2], 1
      %v255 = vld [vmem:[%s254] ss:$2 sm:$0xff]
      %s256 = scalar_lea.vmem [#allocation2], 49
      %v257 = vld [vmem:[%s256] ss:$2 sm:$0xff]
      %s258 = scalar_lea.vmem [#allocation2], 97
      %v259 = vld [vmem:[%s258] ss:$2 sm:$0xff]
      %s260 = scalar_lea.vmem [#allocation2], 145
      %v261 = vld [vmem:[%s260] ss:$2 sm:$0xff]
      %s262 = scalar_lea.vmem [#allocation2], 193
      %v263 = vld [vmem:[%s262] ss:$2 sm:$0xff]
      %s264 = scalar_lea.vmem [#allocation2], 241
      %v265 = vld [vmem:[%s264] ss:$2 sm:$0xff]
      %s266 = scalar_lea.vmem [#allocation2], 289
      %v267 = vld [vmem:[%s266] ss:$2 sm:$0xff]
      %s268 = scalar_lea.vmem [#allocation2], 337
      %v269 = vld [vmem:[%s268] ss:$2 sm:$0xff]
      %v270 = vmax.f32 %v239, %v255
      %v271 = vmax.f32 %v241, %v257
      %v272 = vmax.f32 %v243, %v259
      %v273 = vmax.f32 %v245, %v261
      %v274 = vmax.f32 %v247, %v263
      %v275 = vmax.f32 %v249, %v265
      %v276 = vmax.f32 %v251, %v267
      %v277 = vmax.f32 %v253, %v269
      %s278 = scalar_lea.vmem [#allocation2], 2
      %v279 = vld [vmem:[%s278] ss:$2 sm:$0xff]
      %s280 = scalar_lea.vmem [#allocation2], 50
      %v281 = vld [vmem:[%s280] ss:$2 sm:$0xff]
      %s282 = scalar_lea.vmem [#allocation2], 98
      %v283 = vld [vmem:[%s282] ss:$2 sm:$0xff]
      %s284 = scalar_lea.vmem [#allocation2], 146
      %v285 = vld [vmem:[%s284] ss:$2 sm:$0xff]
      %s286 = scalar_lea.vmem [#allocation2], 194
      %v287 = vld [vmem:[%s286] ss:$2 sm:$0xff]
      %s288 = scalar_lea.vmem [#allocation2], 242
      %v289 = vld [vmem:[%s288] ss:$2 sm:$0xff]
      %s290 = scalar_lea.vmem [#allocation2], 290
      %v291 = vld [vmem:[%s290] ss:$2 sm:$0xff]
      %s292 = scalar_lea.vmem [#allocation2], 338
      %v293 = vld [vmem:[%s292] ss:$2 sm:$0xff]
      %v294 = vmax.f32 %v270, %v279
      %v295 = vmax.f32 %v271, %v281
      %v296 = vmax.f32 %v272, %v283
      %v297 = vmax.f32 %v273, %v285
      %v298 = vmax.f32 %v274, %v287
      %v299 = vmax.f32 %v275, %v289
      %v300 = vmax.f32 %v276, %v291
      %v301 = vmax.f32 %v277, %v293
      %s302 = scalar_lea.vmem [#allocation2], 24
      %v303 = vld [vmem:[%s302] ss:$2 sm:$0xff]
      %s304 = scalar_lea.vmem %s302, 48 [#allocation2]
      %v305 = vld [vmem:[%s304] ss:$2 sm:$0xff]
      %s306 = scalar_lea.vmem %s302, 96 [#allocation2]
      %v307 = vld [vmem:[%s306] ss:$2 sm:$0xff]
      %s308 = scalar_lea.vmem %s302, 144 [#allocation2]
      %v309 = vld [vmem:[%s308] ss:$2 sm:$0xff]
      %s310 = scalar_lea.vmem %s302, 192 [#allocation2]
      %v311 = vld [vmem:[%s310] ss:$2 sm:$0xff]
      %s312 = scalar_lea.vmem %s302, 240 [#allocation2]
      %v313 = vld [vmem:[%s312] ss:$2 sm:$0xff]
      %s314 = scalar_lea.vmem %s302, 288 [#allocation2]
      %v315 = vld [vmem:[%s314] ss:$2 sm:$0xff]
      %s316 = scalar_lea.vmem %s302, 336 [#allocation2]
      %v317 = vld [vmem:[%s316] ss:$2 sm:$0xff]
      %v318 = vmax.f32 %v294, %v303
      %v319 = vmax.f32 %v295, %v305
      %v320 = vmax.f32 %v296, %v307
      %v321 = vmax.f32 %v297, %v309
      %v322 = vmax.f32 %v298, %v311
      %v323 = vmax.f32 %v299, %v313
      %v324 = vmax.f32 %v300, %v315
      %v325 = vmax.f32 %v301, %v317
      %s326 = scalar_lea.vmem %s302, 1 [#allocation2]
      %v327 = vld [vmem:[%s326] ss:$2 sm:$0xff]
      %s328 = scalar_lea.vmem %s302, 49 [#allocation2]
      %v329 = vld [vmem:[%s328] ss:$2 sm:$0xff]
      %s330 = scalar_lea.vmem %s302, 97 [#allocation2]
      %v331 = vld [vmem:[%s330] ss:$2 sm:$0xff]
      %s332 = scalar_lea.vmem %s302, 145 [#allocation2]
      %v333 = vld [vmem:[%s332] ss:$2 sm:$0xff]
      %s334 = scalar_lea.vmem %s302, 193 [#allocation2]
      %v335 = vld [vmem:[%s334] ss:$2 sm:$0xff]
      %s336 = scalar_lea.vmem %s302, 241 [#allocation2]
      %v337 = vld [vmem:[%s336] ss:$2 sm:$0xff]
      %s338 = scalar_lea.vmem %s302, 289 [#allocation2]
      %v339 = vld [vmem:[%s338] ss:$2 sm:$0xff]
      %s340 = scalar_lea.vmem %s302, 337 [#allocation2]
      %v341 = vld [vmem:[%s340] ss:$2 sm:$0xff]
      %v342 = vmax.f32 %v318, %v327
      %v343 = vmax.f32 %v319, %v329
      %v344 = vmax.f32 %v320, %v331
      %v345 = vmax.f32 %v321, %v333
      %v346 = vmax.f32 %v322, %v335
      %v347 = vmax.f32 %v323, %v337
      %v348 = vmax.f32 %v324, %v339
      %v349 = vmax.f32 %v325, %v341
      %s350 = scalar_lea.vmem %s302, 2 [#allocation2]
      %v351 = vld [vmem:[%s350] ss:$2 sm:$0xff]
      %s352 = scalar_lea.vmem %s302, 50 [#allocation2]
      %v353 = vld [vmem:[%s352] ss:$2 sm:$0xff]
      %s354 = scalar_lea.vmem %s302, 98 [#allocation2]
      %v355 = vld [vmem:[%s354] ss:$2 sm:$0xff]
      %s356 = scalar_lea.vmem %s302, 146 [#allocation2]
      %v357 = vld [vmem:[%s356] ss:$2 sm:$0xff]
      %s358 = scalar_lea.vmem %s302, 194 [#allocation2]
      %v359 = vld [vmem:[%s358] ss:$2 sm:$0xff]
      %s360 = scalar_lea.vmem %s302, 242 [#allocation2]
      %v361 = vld [vmem:[%s360] ss:$2 sm:$0xff]
      %s362 = scalar_lea.vmem %s302, 290 [#allocation2]
      %v363 = vld [vmem:[%s362] ss:$2 sm:$0xff]
      %s364 = scalar_lea.vmem %s302, 338 [#allocation2]
      %v365 = vld [vmem:[%s364] ss:$2 sm:$0xff]
      %v366 = vmax.f32 %v342, %v351
      %v367 = vmax.f32 %v343, %v353
      %v368 = vmax.f32 %v344, %v355
      %v369 = vmax.f32 %v345, %v357
      %v370 = vmax.f32 %v346, %v359
      %v371 = vmax.f32 %v347, %v361
      %v372 = vmax.f32 %v348, %v363
      %v373 = vmax.f32 %v349, %v365
      %s374 = scalar_lea.vmem [#allocation2], 48
      %v375 = vld [vmem:[%s374] ss:$2 sm:$0xff]
      %s376 = scalar_lea.vmem %s374, 48 [#allocation2]
      %v377 = vld [vmem:[%s376] ss:$2 sm:$0xff]
      %s378 = scalar_lea.vmem %s374, 96 [#allocation2]
      %v379 = vld [vmem:[%s378] ss:$2 sm:$0xff]
      %s380 = scalar_lea.vmem %s374, 144 [#allocation2]
      %v381 = vld [vmem:[%s380] ss:$2 sm:$0xff]
      %s382 = scalar_lea.vmem %s374, 192 [#allocation2]
      %v383 = vld [vmem:[%s382] ss:$2 sm:$0xff]
      %s384 = scalar_lea.vmem %s374, 240 [#allocation2]
      %v385 = vld [vmem:[%s384] ss:$2 sm:$0xff]
      %s386 = scalar_lea.vmem %s374, 288 [#allocation2]
      %v387 = vld [vmem:[%s386] ss:$2 sm:$0xff]
      %s388 = scalar_lea.vmem %s374, 336 [#allocation2]
      %v389 = vld [vmem:[%s388] ss:$2 sm:$0xff]
      %v390 = vmax.f32 %v366, %v375
      %v391 = vmax.f32 %v367, %v377
      %v392 = vmax.f32 %v368, %v379
      %v393 = vmax.f32 %v369, %v381
      %v394 = vmax.f32 %v370, %v383
      %v395 = vmax.f32 %v371, %v385
      %v396 = vmax.f32 %v372, %v387
      %v397 = vmax.f32 %v373, %v389
      %s398 = scalar_lea.vmem %s374, 1 [#allocation2]
      %v399 = vld [vmem:[%s398] ss:$2 sm:$0xff]
      %s400 = scalar_lea.vmem %s374, 49 [#allocation2]
      %v401 = vld [vmem:[%s400] ss:$2 sm:$0xff]
      %s402 = scalar_lea.vmem %s374, 97 [#allocation2]
      %v403 = vld [vmem:[%s402] ss:$2 sm:$0xff]
      %s404 = scalar_lea.vmem %s374, 145 [#allocation2]
      %v405 = vld [vmem:[%s404] ss:$2 sm:$0xff]
      %s406 = scalar_lea.vmem %s374, 193 [#allocation2]
      %v407 = vld [vmem:[%s406] ss:$2 sm:$0xff]
      %s408 = scalar_lea.vmem %s374, 241 [#allocation2]
      %v409 = vld [vmem:[%s408] ss:$2 sm:$0xff]
      %s410 = scalar_lea.vmem %s374, 289 [#allocation2]
      %v411 = vld [vmem:[%s410] ss:$2 sm:$0xff]
      %s412 = scalar_lea.vmem %s374, 337 [#allocation2]
      %v413 = vld [vmem:[%s412] ss:$2 sm:$0xff]
      %v414 = vmax.f32 %v390, %v399
      %v415 = vmax.f32 %v391, %v401
      %v416 = vmax.f32 %v392, %v403
      %v417 = vmax.f32 %v393, %v405
      %v418 = vmax.f32 %v394, %v407
      %v419 = vmax.f32 %v395, %v409
      %v420 = vmax.f32 %v396, %v411
      %v421 = vmax.f32 %v397, %v413
      %s422 = scalar_lea.vmem %s374, 2 [#allocation2]
      %v423 = vld [vmem:[%s422] ss:$2 sm:$0xff]
      %s424 = scalar_lea.vmem %s374, 50 [#allocation2]
      %v425 = vld [vmem:[%s424] ss:$2 sm:$0xff]
      %s426 = scalar_lea.vmem %s374, 98 [#allocation2]
      %v427 = vld [vmem:[%s426] ss:$2 sm:$0xff]
      %s428 = scalar_lea.vmem %s374, 146 [#allocation2]
      %v429 = vld [vmem:[%s428] ss:$2 sm:$0xff]
      %s430 = scalar_lea.vmem %s374, 194 [#allocation2]
      %v431 = vld [vmem:[%s430] ss:$2 sm:$0xff]
      %s432 = scalar_lea.vmem %s374, 242 [#allocation2]
      %v433 = vld [vmem:[%s432] ss:$2 sm:$0xff]
      %s434 = scalar_lea.vmem %s374, 290 [#allocation2]
      %v435 = vld [vmem:[%s434] ss:$2 sm:$0xff]
      %s436 = scalar_lea.vmem %s374, 338 [#allocation2]
      %v437 = vld [vmem:[%s436] ss:$2 sm:$0xff]
      %v438 = vmax.f32 %v414, %v423
      %v439 = vmax.f32 %v415, %v425
      %v440 = vmax.f32 %v416, %v427
      %v441 = vmax.f32 %v417, %v429
      %v442 = vmax.f32 %v418, %v431
      %v443 = vmax.f32 %v419, %v433
      %v444 = vmax.f32 %v420, %v435
      %v445 = vmax.f32 %v421, %v437
      %446 = vst.msk [vmem:[%s147] sm:$0xff] %vm149, %v438
      %447 = vst.msk [vmem:[%s147 + $0x8] sm:$0xff] %vm149, %v439
      %448 = vst.msk [vmem:[%s147 + $0x10] sm:$0xff] %vm149, %v440
      %449 = vst.msk [vmem:[%s147 + $0x18] sm:$0xff] %vm149, %v441
      %450 = vst.msk [vmem:[%s147 + $0x20] sm:$0xff] %vm149, %v442
      %451 = vst.msk [vmem:[%s147 + $0x28] sm:$0xff] %vm149, %v443
      %452 = vst.msk [vmem:[%s147 + $0x30] sm:$0xff] %vm149, %v444
      %453 = vst.msk [vmem:[%s147 + $0x38] sm:$0xff] %vm149, %v445
      %p454 = scmp.lt.s32.totalorder %s16, 1
      %s455 = scalar_select %p454, %s16, 1
      %p456 = scmp.lt.s32.totalorder %s17, 0
      %s457 = scalar_select %p456, %s17, 0
      %s458 = smul.addr %s455, 8
      %s459 = sadd.s32 %s457, %s458
      %s460 = smul.addr %s459, 8
      %s461 = scalar_lea.vmem %s1, %s460
      // Predicated region
      $region25: #{tpu_custom_call.1} parent=23 // pred_check
        %p462 = pneg %p72
      $region26: #{tpu_custom_call.1} parent=23 // pred_check_branch
        %464 = sbr.rel (%p462) target = $region28
      $region27: #{tpu_custom_call.1} parent=23 // pred_region
        _
      $region28: #{tpu_custom_call.1} parent=23 // pred_fallthru
        _
    $region24: #{tpu_custom_call.1} parent=5 // pred_fallthru
      _
    %p465 = scmp.le.s32.totalorder 2, %s7
    // Predicated region
    $region29: #{tpu_custom_call.1} parent=5 // pred_check
      %p466 = pneg %p465
    $region30: #{tpu_custom_call.1} parent=5 // pred_check_branch
      %468 = sbr.rel (%p466) target = $region32
    $region31: #{tpu_custom_call.1} parent=5 // pred_region
      %s469 = ssub.s32 %s7, 2
      // Predicated region
      $region33: #{tpu_custom_call.1} parent=31 // pred_check
        %p470 = pneg %p78
      $region34: #{tpu_custom_call.1} parent=31 // pred_check_branch
        %472 = sbr.rel (%p470) target = $region36
      $region35: #{tpu_custom_call.1} parent=31 // pred_region
        %p473 = scmp.lt.s32.totalorder %s18, 1
        %s474 = scalar_select %p473, %s18, 1
        %p475 = scmp.lt.s32.totalorder %s19, 0
        %s476 = scalar_select %p475, %s19, 0
        %s477 = smul.addr %s474, 8
        %s478 = sadd.s32 %s476, %s477
        %s479 = smul.addr %s478, 8
        %s480 = scalar_lea.vmem %s1, %s479
      $region36: #{tpu_custom_call.1} parent=31 // pred_fallthru
        _
    $region32: #{tpu_custom_call.1} parent=5 // pred_fallthru
      _
  $region6: #{tpu_custom_call.1} parent=0 // loop_footer
    %s11 = sadd.s32 1, %s7
  $region7: #{tpu_custom_call.1} parent=0 // loop_footer_branch
    %6 = sbr.rel target = $region3
  $region8: #{tpu_custom_call.1} parent=0 // loop_exit
    _

</llo_original>
